<compile_context>
chip_gen: v7x
topology: tpu7x:2x2x1
jax: 0.10.0
libtpu: 0.0.40
codegen_flags: <defaults>
</compile_context>

<pallas_src>
import jax
import jax.numpy as jnp
from jax.experimental import pallas as pl
from jax.experimental.pallas import tpu as pltpu

# ---------------- problem sizes (small, consistent with the forward) ---------
VOCAB = 64    # synthetic codon vocabulary
SEQ   = 8     # sequence length of x
HID   = 32    # hidden width of the synthetic inner model
NCLS  = 4     # number of logit channels (channel 1 is selected, as in model_DD)


# ---------------- fused Pallas kernel: gather -> MLP -> channel-1 scalar -----
def _fused_dd_kernel(ids_ref, idx_ref, emb_ref, w1_ref, b1_ref,
                     w2c_ref, b2c_ref, o_ref):
    # ids_ref : (S,)   int32, SMEM  token ids (the PyTorch input_ids row)
    # idx_ref : (1,)   int32, SMEM  index_val
    # emb_ref : (V,H)  f32,   VMEM  embedding table (8 KiB - trivially fits)
    # w1_ref  : (H,H)  f32,   VMEM
    # b1_ref  : (1,H)  f32,   VMEM
    # w2c_ref : (H,1)  f32,   VMEM  column 1 of the logit projection
    # b2c_ref : (1,1)  f32,   VMEM  bias of logit channel 1
    # o_ref   : (1,1)  f32,   VMEM  logits[index_val, 1]
    idx = idx_ref[0]
    tok = ids_ref[idx]                         # x[index_val]  (SMEM scalar read)
    e = emb_ref[pl.ds(tok, 1), :]              # (1, H) in-kernel embedding gather

    h = jnp.dot(e, w1_ref[...], preferred_element_type=jnp.float32) + b1_ref[...]
    # Synthetic inner model uses tanh-approx GELU, consistently with the
    # reference check below. A real PyTorch nn.GELU defaults to exact erf:
    # use approximate=False there to match.
    h = jax.nn.gelu(h, approximate=True)

    y = jnp.dot(h, w2c_ref[...], preferred_element_type=jnp.float32) + b2c_ref[...]
    o_ref[...] = y.astype(o_ref.dtype)


def _fused_dd_call(ids, idx, emb, w1, b1, w2c, b2c):
    return pl.pallas_call(
        _fused_dd_kernel,
        out_shape=jax.ShapeDtypeStruct((1, 1), jnp.float32),
        in_specs=[
            pl.BlockSpec(memory_space=pltpu.MemorySpace.SMEM),  # ids
            pl.BlockSpec(memory_space=pltpu.MemorySpace.SMEM),  # index_val
            pl.BlockSpec(memory_space=pltpu.MemorySpace.VMEM),  # emb
            pl.BlockSpec(memory_space=pltpu.MemorySpace.VMEM),  # w1
            pl.BlockSpec(memory_space=pltpu.MemorySpace.VMEM),  # b1
            pl.BlockSpec(memory_space=pltpu.MemorySpace.VMEM),  # w2 column 1
            pl.BlockSpec(memory_space=pltpu.MemorySpace.VMEM),  # b2 channel 1
        ],
        out_specs=pl.BlockSpec(memory_space=pltpu.MemorySpace.VMEM),
    )(ids, idx, emb, w1, b1, w2c, b2c)


# ---------------- synthetic inner model (deterministic params) ---------------
def init_params(key):
    k_emb, k_w1, k_w2 = jax.random.split(key, 3)
    emb = jax.random.normal(k_emb, (VOCAB, HID), jnp.float32) * 0.02
    w1  = jax.random.normal(k_w1, (HID, HID), jnp.float32) * (1.0 / jnp.sqrt(HID))
    b1  = jnp.zeros((1, HID), jnp.float32)
    w2  = jax.random.normal(k_w2, (HID, NCLS), jnp.float32) * (1.0 / jnp.sqrt(HID))
    b2  = jnp.zeros((1, NCLS), jnp.float32)
    # Hoisted once at init: model_DD only ever reads logit channel 1.
    return dict(emb=emb, w1=w1, b1=b1, w2=w2, b2=b2,
                w2_c1=w2[:, 1:2], b2_c1=b2[:, 1:2])


# ---------------- model_DD.forward equivalent --------------------------------
@jax.jit
def model_dd_forward(params, x, index_val):
    # x: (S,) token ids (any int dtype), index_val: scalar int (traced)
    ids = x.astype(jnp.int32)                              # int32 cast, as in forward
    idx = jnp.asarray(index_val, jnp.int32).reshape(1)     # (1,) SMEM scalar
    out = _fused_dd_call(ids, idx, params["emb"], params["w1"], params["b1"],
                         params["w2_c1"], params["b2_c1"])  # (1, 1)
    return out[:, 0]                                        # (1,) == pred_fin[index_val].unsqueeze(0)


if __name__ == "__main__":
    key = jax.random.PRNGKey(0)
    k_params, k_x = jax.random.split(key)
    params = init_params(k_params)

    x = jax.random.randint(k_x, (SEQ,), 0, VOCAB, dtype=jnp.int32)
    index_val = 3
    assert 0 <= index_val < SEQ, "index_val out of range for the sequence"

    out = model_dd_forward(params, x, index_val)
    out = jax.block_until_ready(out)

    assert out.shape == (1,), f"unexpected output shape {out.shape}"
    assert out.dtype == jnp.float32

    # reference: full inner-model math in plain JAX, then the model_DD selection
    x_emb = jnp.take(params["emb"], x, axis=0)
    h_ref = jax.nn.gelu(x_emb @ params["w1"] + params["b1"], approximate=True)
    logits_ref = h_ref @ params["w2"] + params["b2"]
    ref = logits_ref[:, 1][index_val][None]
    assert jnp.allclose(out, ref, atol=1e-5, rtol=1e-5), (out, ref)

    print("KERNEL_OK")
</pallas_src>

<mosaic_0001>
module attributes {stable_mosaic.version = 11 : i64} {
  func.func @_fused_dd_kernel(%arg0: memref<8xi32, #tpu.memory_space<smem>>, %arg1: memref<1xi32, #tpu.memory_space<smem>>, %arg2: memref<64x32xf32, #tpu.memory_space<vmem>>, %arg3: memref<32x32xf32, #tpu.memory_space<vmem>>, %arg4: memref<1x32xf32, #tpu.memory_space<vmem>>, %arg5: memref<32x1xf32, #tpu.memory_space<vmem>>, %arg6: memref<1x1xf32, #tpu.memory_space<vmem>>, %arg7: memref<1x1xf32, #tpu.memory_space<vmem>>) attributes {dimension_semantics = [], scalar_prefetch = 0 : i64, scratch_operands = 0 : i64, tpu.core_type = #tpu.core_type<tc>} {
    %c0 = arith.constant 0 : index
    %0 = memref.load %arg1[%c0] : memref<1xi32, #tpu.memory_space<smem>>
    %1 = arith.index_cast %0 : i32 to index
    %2 = memref.load %arg0[%1] : memref<8xi32, #tpu.memory_space<smem>>
    %3 = arith.index_cast %2 : i32 to index
    %c0_0 = arith.constant 0 : index
    %4 = vector.load %arg2[%3, %c0_0] : memref<64x32xf32, #tpu.memory_space<vmem>>, vector<1x32xf32>
    %c0_1 = arith.constant 0 : index
    %c0_2 = arith.constant 0 : index
    %5 = vector.load %arg3[%c0_1, %c0_2] : memref<32x32xf32, #tpu.memory_space<vmem>>, vector<32x32xf32>
    %cst = arith.constant dense<0.000000e+00> : vector<1x32xf32>
    %6 = tpu.matmul %4, %5, %cst {dimension_numbers = #tpu.dot_dimension_numbers<[1], [0], [0], [1], [0, 0, 1, 1], [], []>} : vector<1x32xf32>, vector<32x32xf32>, vector<1x32xf32> -> vector<1x32xf32>
    %c0_3 = arith.constant 0 : index
    %c0_4 = arith.constant 0 : index
    %7 = vector.load %arg4[%c0_3, %c0_4] : memref<1x32xf32, #tpu.memory_space<vmem>>, vector<1x32xf32>
    %8 = arith.addf %6, %7 : vector<1x32xf32>
    %9 = arith.mulf %8, %8 : vector<1x32xf32>
    %10 = arith.mulf %8, %9 : vector<1x32xf32>
    %cst_5 = arith.constant 4.471500e-02 : f32
    %11 = vector.broadcast %cst_5 : f32 to vector<1x32xf32>
    %12 = arith.mulf %11, %10 : vector<1x32xf32>
    %13 = arith.addf %8, %12 : vector<1x32xf32>
    %cst_6 = arith.constant 0.797884583 : f32
    %14 = vector.broadcast %cst_6 : f32 to vector<1x32xf32>
    %15 = arith.mulf %14, %13 : vector<1x32xf32>
    %16 = math.tanh %15 : vector<1x32xf32>
    %cst_7 = arith.constant 1.000000e+00 : f32
    %17 = vector.broadcast %cst_7 : f32 to vector<1x32xf32>
    %18 = arith.addf %17, %16 : vector<1x32xf32>
    %cst_8 = arith.constant 5.000000e-01 : f32
    %19 = vector.broadcast %cst_8 : f32 to vector<1x32xf32>
    %20 = arith.mulf %19, %18 : vector<1x32xf32>
    %21 = arith.mulf %8, %20 : vector<1x32xf32>
    %c0_9 = arith.constant 0 : index
    %c0_10 = arith.constant 0 : index
    %22 = vector.load %arg5[%c0_9, %c0_10] : memref<32x1xf32, #tpu.memory_space<vmem>>, vector<32x1xf32>
    %cst_11 = arith.constant dense<0.000000e+00> : vector<1x1xf32>
    %23 = tpu.matmul %21, %22, %cst_11 {dimension_numbers = #tpu.dot_dimension_numbers<[1], [0], [0], [1], [0, 0, 1, 1], [], []>} : vector<1x32xf32>, vector<32x1xf32>, vector<1x1xf32> -> vector<1x1xf32>
    %c0_12 = arith.constant 0 : index
    %c0_13 = arith.constant 0 : index
    %24 = vector.load %arg6[%c0_12, %c0_13] : memref<1x1xf32, #tpu.memory_space<vmem>>, vector<1x1xf32>
    %25 = arith.addf %23, %24 : vector<1x1xf32>
    %c0_14 = arith.constant 0 : index
    %c0_15 = arith.constant 0 : index
    %26 = vector.load %arg7[%c0_14, %c0_15] : memref<1x1xf32, #tpu.memory_space<vmem>>, vector<1x1xf32>
    tpu.vector_store %arg7[%c0_14, %c0_15], %25 {strides = array<i32>} : memref<1x1xf32, #tpu.memory_space<vmem>>, vector<1x1xf32>,
    return
  }
}

</mosaic_0001>

<llo_original>
// kernel: model_dd_forward.1
$region0: #{model_dd_forward.1}
  #allocation0 [shape = 'u32[]', space=smem, size = 0x4, offset = 0x4, fixed_abs, tag = 'smem constant byte address 0x4 - core index']
  #allocation1 [shape = 'u32[144,128]{1,0:T(1,128)}', space=vmem, size = 0x12000, scoped, tag = 'internal scratch']
  #allocation2 [shape = 's32[1]{0:T(128)S(6)}', space=smem, size = 0x200, scoped, tag = 'scoped memory for model_dd_forward.1']
  #allocation3 [shape = 'f32[1,1]{1,0:T(1,128)S(1)}', space=vmem, size = 0x200, scoped, tag = 'scoped memory for model_dd_forward.1']
  %s0 = inlined_call_operand.vmem [shape: s32[8], index: 0, kind: input, shape index: {}]
  %s1 = inlined_call_operand.<no memory space> [shape: s32[1], index: 1, kind: input, shape index: {}]
  %s2 = inlined_call_operand.vmem [shape: f32[64,32], index: 2, kind: input, shape index: {}]
  %s3 = inlined_call_operand.vmem [shape: f32[32,32], index: 3, kind: input, shape index: {}]
  %s4 = inlined_call_operand.vmem [shape: f32[1,32], index: 4, kind: input, shape index: {}]
  %s5 = inlined_call_operand.vmem [shape: f32[32,1], index: 5, kind: input, shape index: {}]
  %s6 = inlined_call_operand.<no memory space> [shape: f32[1,1], index: 6, kind: input, shape index: {}]
  %s7 = inlined_call_operand.hbm [shape: f32[1,1], index: 7, kind: output, shape index: {}]
  %s8 = sld [smem:[#allocation0]]
  $region42: #{model_dd_forward.1} parent=0
    _
  %s10 = ssub.s32 1, %s8
  %s11 = scalar_select 0, %s10, %s8
  %12 = sst [smem:[#allocation2]] %s1
  %v13 = vstv %s6
  %14 = vst [vmem:[#allocation3] sm:$0x1] %v13
  $region1: #{model_dd_forward.1} parent=0
    #allocation4 [shape = 'u8[512]{0}', space=smem, size = 0x200, scoped, tag = 'input window, operand 0, single buffered']
    #allocation5 [shape = 's32[1]{0}', space=sflag, size = 0x4, scoped, tag = 'scoped memory for model_dd_forward.1']
    #allocation6 [shape = 's32[1]{0}', space=sflag, size = 0x4, scoped, tag = 'scoped memory for model_dd_forward.1']
    #allocation7 [shape = 'u8[512]{0}', space=vmem, size = 0x400, scoped, tag = 'output window, operand 0, single buffered']
    %15 = vsyncpa [#allocation6], 0
    %16 = vsyncpa [#allocation5], 0
    // Predicated region
    $region2: #{model_dd_forward.1} parent=1 // pred_check
      _
    $region3: #{model_dd_forward.1} parent=1 // pred_check_branch
      %18 = sbr.rel (0) target = $region5
    $region4: #{model_dd_forward.1} parent=1 // pred_region
      %s20 = ssub.s32 16, 16
      %21 = vsyncadd [#allocation6], %s20
      %s23 = sshll.u32 %s0, 4
      %s24 = int_to_ptr.vmem [resolvable:$true] %s23
      %26 = dma.vmem_to_smem %s24, 16, [#allocation4], [#allocation6]
    $region5: #{model_dd_forward.1} parent=1 // pred_fallthru
      _
    // Predicated region
    $region6: #{model_dd_forward.1} parent=1 // pred_check
      _
    $region7: #{model_dd_forward.1} parent=1 // pred_check_branch
      %28 = sbr.rel (0) target = $region9
    $region8: #{model_dd_forward.1} parent=1 // pred_region
      _
    $region9: #{model_dd_forward.1} parent=1 // pred_fallthru
      _
    // Predicated region
    $region10: #{model_dd_forward.1} parent=1 // pred_check
      _
    $region11: #{model_dd_forward.1} parent=1 // pred_check_branch
      %30 = sbr.rel (0) target = $region13
    $region12: #{model_dd_forward.1} parent=1 // pred_region
      _
    $region13: #{model_dd_forward.1} parent=1 // pred_fallthru
      _
    // Predicated region
    $region14: #{model_dd_forward.1} parent=1 // pred_check
      _
    $region15: #{model_dd_forward.1} parent=1 // pred_check_branch
      %32 = sbr.rel (0) target = $region17
    $region16: #{model_dd_forward.1} parent=1 // pred_region
      _
    $region17: #{model_dd_forward.1} parent=1 // pred_fallthru
      _
    // Predicated region
    $region18: #{model_dd_forward.1} parent=1 // pred_check
      _
    $region19: #{model_dd_forward.1} parent=1 // pred_check_branch
      %34 = sbr.rel (0) target = $region21
    $region20: #{model_dd_forward.1} parent=1 // pred_region
      _
    $region21: #{model_dd_forward.1} parent=1 // pred_fallthru
      _
    // Predicated region
    $region22: #{model_dd_forward.1} parent=1 // pred_check
      _
    $region23: #{model_dd_forward.1} parent=1 // pred_check_branch
      %36 = sbr.rel (0) target = $region25
    $region24: #{model_dd_forward.1} parent=1 // pred_region
      _
    $region25: #{model_dd_forward.1} parent=1 // pred_fallthru
      _
    // Predicated region
    $region26: #{model_dd_forward.1} parent=1 // pred_check
      _
    $region27: #{model_dd_forward.1} parent=1 // pred_check_branch
      %38 = sbr.rel (0) target = $region29
    $region28: #{model_dd_forward.1} parent=1 // pred_region
      _
    $region29: #{model_dd_forward.1} parent=1 // pred_fallthru
      _
    // Predicated region
    $region30: #{model_dd_forward.1} parent=1 // pred_check
      _
    $region31: #{model_dd_forward.1} parent=1 // pred_check_branch
      %40 = sbr.rel (0) target = $region33
    $region32: #{model_dd_forward.1} parent=1 // pred_region
      %41 = dma.done [#allocation6], 16
    $region33: #{model_dd_forward.1} parent=1 // pred_fallthru
      _
    %42 = sfence
    %s43 = sld [smem:[#allocation2]]
    %s44 = sld [smem:[#allocation4 + %s43]]
    %s45 = scalar_lea.vmem %s2, %s44
    %v46 = vld [vmem:[%s45] sm:$0x1]
    %v47 = vld [vmem:[%s3] sm:$0xff]
    %v48 = vld [vmem:[%s3 + $0x8] sm:$0xff]
    %v49 = vld [vmem:[%s3 + $0x10] sm:$0xff]
    %v50 = vld [vmem:[%s3 + $0x18] sm:$0xff]
    %v51 = vld [vmem:[%s4] sm:$0x1]
    %vm52 = vcmask 261120
    %v54 = vsel %vm52, %v46, 0
    %56 = vmatprep.subr.mxu0 0.0
    %57 = vmatpush1.msra.mxu0 %v47
    %58 = vmatprep.subr.mxu0 0.0
    %59 = vmatpush1.msra.mxu0 %v48
    %60 = vmatprep.subr.mxu0 0.0
    %61 = vmatpush1.msra.mxu0 %v49
    %62 = vmatprep.subr.mxu0 0.0
    %63 = vmatpush1.msra.mxu0 %v50
    %64 = vmatprep.subr.mxu0 0.0
    %65 = vmatpush1.msra.mxu0 0.0
    %66 = vmatprep.subr.mxu0 0.0
    %67 = vmatpush1.msra.mxu0 0.0
    %68 = vmatprep.subr.mxu0 0.0
    %69 = vmatpush1.msra.mxu0 0.0
    %70 = vmatprep.subr.mxu0 0.0
    %71 = vmatpush1.msra.mxu0 0.0
    %72 = vmatprep.subr.mxu0 0.0
    %73 = vmatpush1.msra.mxu0 0.0
    %74 = vmatprep.subr.mxu0 0.0
    %75 = vmatpush1.msra.mxu0 0.0
    %76 = vmatprep.subr.mxu0 0.0
    %77 = vmatpush1.msra.mxu0 0.0
    %78 = vmatprep.subr.mxu0 0.0
    %79 = vmatpush1.msra.mxu0 0.0
    %80 = vmatprep.subr.mxu0 0.0
    %81 = vmatpush1.msra.mxu0 0.0
    %82 = vmatprep.subr.mxu0 0.0
    %83 = vmatpush1.msra.mxu0 0.0
    %84 = vmatprep.subr.mxu0 0.0
    %85 = vmatpush1.msra.mxu0 0.0
    %86 = vmatprep.subr.mxu0 0.0
    %87 = vmatpush1.msra.mxu0 0.0
    %88 = vmatprep.subr.mxu0 0.0
    %89 = vmatpush1.msra.mxu0 0.0
    %90 = vmatprep.subr.mxu0 0.0
    %91 = vmatpush1.msra.mxu0 0.0
    %92 = vmatprep.subr.mxu0 0.0
    %93 = vmatpush1.msra.mxu0 0.0
    %94 = vmatprep.subr.mxu0 0.0
    %95 = vmatpush1.msra.mxu0 0.0
    %96 = vmatprep.subr.mxu0 0.0
    %97 = vmatpush1.msra.mxu0 0.0
    %98 = vmatprep.subr.mxu0 0.0
    %99 = vmatpush1.msra.mxu0 0.0
    %100 = vmatprep.subr.mxu0 0.0
    %101 = vmatpush1.msra.mxu0 0.0
    %102 = vmatprep.subr.mxu0 0.0
    %103 = vmatpush1.msra.mxu0 0.0
    %104 = vmatprep.subr.mxu0 0.0
    %105 = vmatpush1.msra.mxu0 0.0
    %106 = vmatprep.subr.mxu0 0.0
    %107 = vmatpush1.msra.mxu0 0.0
    %108 = vmatprep.subr.mxu0 0.0
    %109 = vmatpush1.msra.mxu0 0.0
    %110 = vmatprep.subr.mxu0 0.0
    %111 = vmatpush1.msra.mxu0 0.0
    %112 = vmatprep.subr.mxu0 0.0
    %113 = vmatpush1.msra.mxu0 0.0
    %114 = vmatprep.subr.mxu0 0.0
    %115 = vmatpush1.msra.mxu0 0.0
    %116 = vmatprep.subr.mxu0 0.0
    %117 = vmatpush1.msra.mxu0 0.0
    %118 = vmatprep.subr.mxu0 0.0
    %119 = vmatpush1.msra.mxu0 0.0
    %120 = vmatprep.mubr.f32.mxu0 0.0
    %121 = vmatmul.mubr.f32.gmra.mrb[0].mxu0 %v54
    %v122 = vpop.f32.mrb[0].mxu0
    %v123 = vadd.f32 %v51, %v122
    %v124 = vpop.f32.mrb[0].mxu0
    %125 = vdwg.mxu0
    %v126 = vmul.f32 %v123, %v123
    %v127 = vmul.f32 %v123, %v126
    %v128 = vmul.f32 %v127, 0.044715
    %v129 = vadd.f32 %v123, %v128
    %v130 = vmul.f32 %v129, 0.7978846
    %v131 = vtanh.pop %v130
    %v132 = vadd.f32 %v131, 1.0
    %v133 = vmul.f32 %v132, 0.5
    %v134 = vmul.f32 %v123, %v133
    %v135 = vld [vmem:[%s5] sm:$0xff]
    %v136 = vld [vmem:[%s5 + $0x8] sm:$0xff]
    %v137 = vld [vmem:[%s5 + $0x10] sm:$0xff]
    %v138 = vld [vmem:[%s5 + $0x18] sm:$0xff]
    %v139 = vld [vmem:[#allocation3] sm:$0x1]
    %v141 = vsel %vm52, %v134, 0
    %143 = vmatprep.subr.mxu0 0.0
    %144 = vmatpush1.msra.mxu0 %v135
    %145 = vmatprep.subr.mxu0 0.0
    %146 = vmatpush1.msra.mxu0 %v136
    %147 = vmatprep.subr.mxu0 0.0
    %148 = vmatpush1.msra.mxu0 %v137
    %149 = vmatprep.subr.mxu0 0.0
    %150 = vmatpush1.msra.mxu0 %v138
    %151 = vmatprep.subr.mxu0 0.0
    %152 = vmatpush1.msra.mxu0 0.0
    %153 = vmatprep.subr.mxu0 0.0
    %154 = vmatpush1.msra.mxu0 0.0
    %155 = vmatprep.subr.mxu0 0.0
    %156 = vmatpush1.msra.mxu0 0.0
    %157 = vmatprep.subr.mxu0 0.0
    %158 = vmatpush1.msra.mxu0 0.0
    %159 = vmatprep.subr.mxu0 0.0
    %160 = vmatpush1.msra.mxu0 0.0
    %161 = vmatprep.subr.mxu0 0.0
    %162 = vmatpush1.msra.mxu0 0.0
    %163 = vmatprep.subr.mxu0 0.0
    %164 = vmatpush1.msra.mxu0 0.0
    %165 = vmatprep.subr.mxu0 0.0
    %166 = vmatpush1.msra.mxu0 0.0
    %167 = vmatprep.subr.mxu0 0.0
    %168 = vmatpush1.msra.mxu0 0.0
    %169 = vmatprep.subr.mxu0 0.0
    %170 = vmatpush1.msra.mxu0 0.0
    %171 = vmatprep.subr.mxu0 0.0
    %172 = vmatpush1.msra.mxu0 0.0
    %173 = vmatprep.subr.mxu0 0.0
    %174 = vmatpush1.msra.mxu0 0.0
    %175 = vmatprep.subr.mxu0 0.0
    %176 = vmatpush1.msra.mxu0 0.0
    %177 = vmatprep.subr.mxu0 0.0
    %178 = vmatpush1.msra.mxu0 0.0
    %179 = vmatprep.subr.mxu0 0.0
    %180 = vmatpush1.msra.mxu0 0.0
    %181 = vmatprep.subr.mxu0 0.0
    %182 = vmatpush1.msra.mxu0 0.0
    %183 = vmatprep.subr.mxu0 0.0
    %184 = vmatpush1.msra.mxu0 0.0
    %185 = vmatprep.subr.mxu0 0.0
    %186 = vmatpush1.msra.mxu0 0.0
    %187 = vmatprep.subr.mxu0 0.0
    %188 = vmatpush1.msra.mxu0 0.0
    %189 = vmatprep.subr.mxu0 0.0
    %190 = vmatpush1.msra.mxu0 0.0
    %191 = vmatprep.subr.mxu0 0.0
    %192 = vmatpush1.msra.mxu0 0.0
    %193 = vmatprep.subr.mxu0 0.0
    %194 = vmatpush1.msra.mxu0 0.0
    %195 = vmatprep.subr.mxu0 0.0
    %196 = vmatpush1.msra.mxu0 0.0
    %197 = vmatprep.subr.mxu0 0.0
    %198 = vmatpush1.msra.mxu0 0.0
    %199 = vmatprep.subr.mxu0 0.0
    %200 = vmatpush1.msra.mxu0 0.0
    %201 = vmatprep.subr.mxu0 0.0
    %202 = vmatpush1.msra.mxu0 0.0
    %203 = vmatprep.subr.mxu0 0.0
    %204 = vmatpush1.msra.mxu0 0.0
    %205 = vmatprep.subr.mxu0 0.0
    %206 = vmatpush1.msra.mxu0 0.0
    %207 = vmatprep.mubr.f32.mxu0 0.0
    %208 = vmatmul.mubr.f32.gmra.mrb[0].mxu0 %v141
    %v209 = vpop.f32.mrb[0].mxu0
    %v210 = vadd.f32 %v139, %v209
    %v211 = vpop.f32.mrb[0].mxu0
    %212 = vdwg.mxu0
    %vm213 = vcmask 0
    %214 = vst.msk [vmem:[#allocation7] sm:$0x1] %vm213, %v210
    // Predicated region
    $region34: #{model_dd_forward.1} parent=1 // pred_check
      _
    $region35: #{model_dd_forward.1} parent=1 // pred_check_branch
      %216 = sbr.rel (0) target = $region37
    $region36: #{model_dd_forward.1} parent=1 // pred_region
      %s218 = ssub.s32 16, 16
      %219 = vsyncadd [#allocation5], %s218
      %s221 = sshll.u32 [#allocation7], 4
      %s222 = int_to_ptr.vmem [resolvable:$true] %s221
      %224 = dma.vmem_to_hbm [thread:$0]  %s222, 16, %s7, [#allocation5]
    $region37: #{model_dd_forward.1} parent=1 // pred_fallthru
      _
    // Predicated region
    $region38: #{model_dd_forward.1} parent=1 // pred_check
      _
    $region39: #{model_dd_forward.1} parent=1 // pred_check_branch
      %226 = sbr.rel (0) target = $region41
    $region40: #{model_dd_forward.1} parent=1 // pred_region
      %227 = dma.done [#allocation5], 16
    $region41: #{model_dd_forward.1} parent=1 // pred_fallthru
      _
    %228 = vsyncpa [#allocation5], 1
    %229 = vsyncpa [#allocation6], 1

</llo_original>
